<compile_context>
chip_gen: v6e
topology: v6e:2x2x1
jax: 0.10.0
libtpu: 0.0.40
codegen_flags: <defaults>
</compile_context>

<pallas_src>
import jax
import jax.numpy as jnp
from jax.experimental import pallas as pl
from jax.experimental.pallas import tpu as pltpu

n_embd = 32
_LANES = 128  # TPU vreg lane width


# --------------------------------------------------------------------------- #
# Kernel
# --------------------------------------------------------------------------- #
def ffwd_kernel(x_ref, w_ref, b_ref, o_ref):
    """One row-tile of y = relu(x @ W_packed + b_packed).

    x_ref: (bm, K)   w_ref: (K, N)  [already in matmul dtype]
    b_ref: (1, N)    o_ref: (bm, N)
    """
    w = w_ref[...]                      # resident weight, pre-cast at init
    x = x_ref[...].astype(w.dtype)      # streamed tile; no-op if dtypes match
    y = jnp.dot(x, w, preferred_element_type=jnp.float32)   # f32 MXU accum
    y = y + b_ref[...]                  # f32 bias add on the VPU
    o_ref[...] = jnp.maximum(y, 0.0).astype(o_ref.dtype)    # ReLU


# --------------------------------------------------------------------------- #
# Packing / tiling plans (init-time, not in the hot path)
# --------------------------------------------------------------------------- #
def _choose_pack(n_feat):
    """How many logical rows fold into one 128-lane row."""
    if n_feat >= _LANES or _LANES % n_feat != 0:
        return 1
    return _LANES // n_feat


def _plan_row_tiling(rows):
    """Return (bm, padded_rows).

    Prefers the largest tile from the candidate list that divides `rows`;
    otherwise pads `rows` up to a multiple of the largest candidate <= rows
    (never the whole-array-in-one-block fallback).  Guarantees >= 2 grid steps
    whenever the padded row count allows it (v7x megacore sharding).
    """
    candidates = (2048, 1024, 512, 256, 128, 64, 32, 16, 8)
    bm = None
    padded = rows
    for c in candidates:
        if rows % c == 0:
            bm = c
            break
    if bm is None:
        base = next((c for c in candidates if c <= rows), 8)
        padded = -(-rows // base) * base
        bm = base
    # Guarantee >= 2 grid steps when possible (second-to-last block dim must
    # stay a multiple of 8 for f32).
    if padded // bm == 1 and padded >= 16:
        half = padded // 2
        if half % 8 == 0:
            bm = half
    return bm, padded


def prepare_ffwd_params(weight, bias, pack, *, matmul_dtype=jnp.bfloat16):
    """One-time parameter packing (do at init time, NOT per call).

    weight: (C_out, C_in) PyTorch layout.  bias: (C_out,).
    Returns (w_packed, b_packed) with w_packed = kron(I_pack, W^T) cast once to
    `matmul_dtype`, so a lane-dense row slab [x_0 | ... | x_{pack-1}] @ w_packed
    applies x_i @ W^T to each C-wide chunk independently.  Bias stays f32.
    """
    c_out, _ = weight.shape
    w_t = weight.T                                   # transpose once, off hot path
    if pack == 1:
        w_packed = w_t
        b_packed = bias.reshape(1, c_out)
    else:
        w_packed = jnp.kron(jnp.eye(pack, dtype=w_t.dtype), w_t)   # (pack*C, pack*C)
        b_packed = jnp.tile(bias, pack).reshape(1, pack * c_out)
    return w_packed.astype(matmul_dtype), b_packed.astype(jnp.float32)


# --------------------------------------------------------------------------- #
# Forward wrapper
# --------------------------------------------------------------------------- #
def feed_forward(x, w_packed, b_packed, *, pack):
    """y = relu(x @ W^T + b).  x: (B, T, C); params from prepare_ffwd_params."""
    B, T, C = x.shape
    M = B * T
    K = C * pack
    N = b_packed.shape[-1]

    # Flatten, then pad M up to a multiple of `pack` so every 128-lane row is
    # fully dense (keeps stores as unmasked vst).
    x2d = x.reshape(M, C)
    m_pad = -(-M // pack) * pack
    if m_pad != M:
        x2d = jnp.pad(x2d, ((0, m_pad - M), (0, 0)))
    rows = m_pad // pack
    x2d = x2d.reshape(rows, K)           # pure row-major regrouping

    # Pad rows to a multiple of the chosen tile; never a single giant block.
    bm, padded_rows = _plan_row_tiling(rows)
    if padded_rows != rows:
        x2d = jnp.pad(x2d, ((0, padded_rows - rows), (0, 0)))
    grid = (padded_rows // bm,)

    out = pl.pallas_call(
        ffwd_kernel,
        out_shape=jax.ShapeDtypeStruct((padded_rows, N), x.dtype),
        grid=grid,
        in_specs=[
            pl.BlockSpec((bm, K), lambda i: (i, 0)),   # x: streamed, double-buffered
            pl.BlockSpec((K, N), lambda i: (0, 0)),    # weight: resident across grid
            pl.BlockSpec((1, N), lambda i: (0, 0)),    # bias: resident across grid
        ],
        out_specs=pl.BlockSpec((bm, N), lambda i: (i, 0)),
        compiler_params=pltpu.CompilerParams(
            # Independent row tiles -> megacore-shardable on v7x (>=2 steps
            # guaranteed by _plan_row_tiling whenever rows allow it).
            dimension_semantics=("parallel",),
            # Per-step footprint at bm=2048, K=N=128 f32:
            #   2*(bm*K + bm*N)*4B (double-buffered x/out) + K*N*4B resident
            #   weight ~= 4.1 MiB  << 32 MiB (safe even on v7x's 64 MiB VMEM).
            vmem_limit_bytes=32 * 1024 * 1024,
        ),
    )(x2d, w_packed, b_packed)

    # Undo padding + packing: (padded_rows, pack*C) -> (M, C) -> (B, T, C).
    out = out[:rows].reshape(m_pad, C)[:M]
    return out.reshape(B, T, C)


# --------------------------------------------------------------------------- #
# Demo / self-test
# --------------------------------------------------------------------------- #
if __name__ == "__main__":
    key = jax.random.PRNGKey(0)
    k_x, k_w, k_b, k_x2 = jax.random.split(key, 4)

    batch, seq = 2, 8
    x = jax.random.normal(k_x, (batch, seq, n_embd), dtype=jnp.float32)

    # nn.Linear-style init: U(-1/sqrt(in), 1/sqrt(in)).
    bound = 1.0 / jnp.sqrt(jnp.float32(n_embd))
    weight = jax.random.uniform(k_w, (n_embd, n_embd), jnp.float32, -bound, bound)
    bias = jax.random.uniform(k_b, (n_embd,), jnp.float32, -bound, bound)

    pack = _choose_pack(n_embd)

    # One-time (init-time) parameter packing — not in the hot path.
    w_bf16, b_packed = prepare_ffwd_params(weight, bias, pack)                 # bf16 default
    w_f32, _ = prepare_ffwd_params(weight, bias, pack, matmul_dtype=jnp.float32)

    # Plain-JAX reference.
    y_ref = jnp.maximum(x @ weight.T + bias, 0.0)

    # 1) Default path: bf16 MXU operands, f32 accumulation + bias + ReLU.
    y = feed_forward(x, w_bf16, b_packed, pack=pack)
    y = jax.block_until_ready(y)
    assert y.shape == (batch, seq, n_embd)
    assert jnp.allclose(y, y_ref, atol=5e-2, rtol=5e-2)

    # 2) Exact-f32 path (matches PyTorch numerics).
    y_f32 = feed_forward(x, w_f32, b_packed, pack=pack)
    y_f32 = jax.block_until_ready(y_f32)
    assert jnp.allclose(y_f32, y_ref, atol=1e-5, rtol=1e-5)

    # 3) Shape that exercises the pack / row padding paths (M not divisible by 4).
    x_odd = jax.random.normal(k_x2, (3, 5, n_embd), dtype=jnp.float32)
    y_odd = jax.block_until_ready(feed_forward(x_odd, w_f32, b_packed, pack=pack))
    y_odd_ref = jnp.maximum(x_odd @ weight.T + bias, 0.0)
    assert jnp.allclose(y_odd, y_odd_ref, atol=1e-5, rtol=1e-5)

    print("KERNEL_OK")
</pallas_src>

<mosaic_0001>
module attributes {stable_mosaic.version = 11 : i64} {
  func.func @ffwd_kernel(%arg0: i32, %arg1: memref<8x128xf32, #tpu.memory_space<vmem>>, %arg2: memref<128x128xbf16, #tpu.memory_space<vmem>>, %arg3: memref<1x128xf32, #tpu.memory_space<vmem>>, %arg4: memref<8x128xf32, #tpu.memory_space<vmem>>) attributes {dimension_semantics = [#tpu.dimension_semantics<parallel>], iteration_bounds = array<i64: 1>, scalar_prefetch = 0 : i64, scratch_operands = 0 : i64, tpu.core_type = #tpu.core_type<tc>, window_params = [{transform_indices = @transform_0, window_bounds = array<i64: 8, 128>}, {pipeline_mode = #tpu.pipeline_mode<synchronous>, transform_indices = @transform_1, window_bounds = array<i64: 128, 128>}, {pipeline_mode = #tpu.pipeline_mode<synchronous>, transform_indices = @transform_2, window_bounds = array<i64: 1, 128>}, {transform_indices = @transform_3, window_bounds = array<i64: 8, 128>}]} {
    %c0 = arith.constant 0 : index
    %c0_0 = arith.constant 0 : index
    %0 = vector.load %arg2[%c0, %c0_0] : memref<128x128xbf16, #tpu.memory_space<vmem>>, vector<128x128xbf16>
    %c0_1 = arith.constant 0 : index
    %c0_2 = arith.constant 0 : index
    %1 = vector.load %arg1[%c0_1, %c0_2] : memref<8x128xf32, #tpu.memory_space<vmem>>, vector<8x128xf32>
    %2 = arith.truncf %1 : vector<8x128xf32> to vector<8x128xbf16>
    %cst = arith.constant dense<0.000000e+00> : vector<8x128xf32>
    %3 = tpu.matmul %2, %0, %cst {dimension_numbers = #tpu.dot_dimension_numbers<[1], [0], [0], [1], [0, 0, 1, 1], [], []>} : vector<8x128xbf16>, vector<128x128xbf16>, vector<8x128xf32> -> vector<8x128xf32>
    %c0_3 = arith.constant 0 : index
    %c0_4 = arith.constant 0 : index
    %4 = vector.load %arg3[%c0_3, %c0_4] : memref<1x128xf32, #tpu.memory_space<vmem>>, vector<1x128xf32>
    %5 = vector.broadcast %4 : vector<1x128xf32> to vector<8x128xf32>
    %6 = arith.addf %3, %5 : vector<8x128xf32>
    %cst_5 = arith.constant 0.000000e+00 : f32
    %7 = vector.broadcast %cst_5 : f32 to vector<8x128xf32>
    %8 = arith.maximumf %6, %7 : vector<8x128xf32>
    %c0_6 = arith.constant 0 : index
    %c0_7 = arith.constant 0 : index
    %9 = vector.load %arg4[%c0_6, %c0_7] : memref<8x128xf32, #tpu.memory_space<vmem>>, vector<8x128xf32>
    tpu.vector_store %arg4[%c0_6, %c0_7], %8 {strides = array<i32>} : memref<8x128xf32, #tpu.memory_space<vmem>>, vector<8x128xf32>,
    return
  }
  func.func @transform_0(%arg0: i32) -> (i32, i32) {
    %c0_i32 = arith.constant 0 : i32
    %c0_i32_0 = arith.constant 0 : i32
    return %arg0, %c0_i32 : i32, i32
  }
  func.func @transform_1(%arg0: i32) -> (i32, i32) {
    %c0_i32 = arith.constant 0 : i32
    %c0_i32_0 = arith.constant 0 : i32
    %c0_i32_1 = arith.constant 0 : i32
    return %c0_i32, %c0_i32_0 : i32, i32
  }
  func.func @transform_2(%arg0: i32) -> (i32, i32) {
    %c0_i32 = arith.constant 0 : i32
    %c0_i32_0 = arith.constant 0 : i32
    %c0_i32_1 = arith.constant 0 : i32
    return %c0_i32, %c0_i32_0 : i32, i32
  }
  func.func @transform_3(%arg0: i32) -> (i32, i32) {
    %c0_i32 = arith.constant 0 : i32
    %c0_i32_0 = arith.constant 0 : i32
    return %arg0, %c0_i32 : i32, i32
  }
}

</mosaic_0001>

<llo_original>
// kernel: tpu_custom_call.1
$region0: #{tpu_custom_call.1}
  #allocation0 [shape = 'u32[]', space=smem, size = 0x4, offset = 0x4, fixed_abs, tag = 'smem constant byte address 0x4 - core index']
  #allocation1 [shape = 'u32[144,128]{1,0:T(1,128)}', space=vmem, size = 0x12000, scoped, tag = 'internal scratch']
  %s0 = inlined_call_operand.hbm [shape: f32[8,128], index: 0, kind: input, shape index: {}]
  %s1 = inlined_call_operand.hbm [shape: bf16[128,128], index: 1, kind: input, shape index: {}]
  %s2 = inlined_call_operand.vmem [shape: f32[1,128], index: 2, kind: input, shape index: {}]
  %s3 = inlined_call_operand.hbm [shape: f32[8,128], index: 3, kind: output, shape index: {}]
  %s4 = sld [smem:[#allocation0]]
  $region30: #{tpu_custom_call.1} parent=0
    _
  %s6 = ssub.s32 1, %s4
  %s7 = scalar_select 0, %s6, %s4
  $region1: #{tpu_custom_call.1} parent=0
    #allocation2 [shape = 'u8[4096]{0}', space=vmem, size = 0x1000, scoped, tag = 'input window, operand 0, single buffered']
    #allocation3 [shape = 's32[1]{0}', space=sflag, size = 0x4, scoped, tag = 'scoped memory for tpu_custom_call.1']
    #allocation4 [shape = 's32[1]{0}', space=sflag, size = 0x4, scoped, tag = 'scoped memory for tpu_custom_call.1']
    #allocation5 [shape = 'u8[32768]{0}', space=vmem, size = 0x8000, scoped, tag = 'input window, operand 1, single buffered']
    #allocation6 [shape = 's32[1]{0}', space=sflag, size = 0x4, scoped, tag = 'scoped memory for tpu_custom_call.1']
    #allocation7 [shape = 'u8[4096]{0}', space=vmem, size = 0x1000, scoped, tag = 'output window, operand 0, single buffered']
    %8 = vsyncpa [#allocation3], 0
    %9 = vsyncpa [#allocation6], 0
    %10 = vsyncpa [#allocation4], 0
    // Predicated region
    $region2: #{tpu_custom_call.1} parent=1 // pred_check
      _
    $region3: #{tpu_custom_call.1} parent=1 // pred_check_branch
      %12 = sbr.rel (0) target = $region5
    $region4: #{tpu_custom_call.1} parent=1 // pred_region
      %s14 = ssub.s32 128, 128
      %15 = vsyncadd [#allocation3], %s14
      %s17 = sshll.u32 [#allocation2], 4
      %s18 = int_to_ptr.vmem [resolvable:$true] %s17
      %20 = dma.hbm_to_vmem [thread:$0]  %s0, 128, %s18, [#allocation3]
    $region5: #{tpu_custom_call.1} parent=1 // pred_fallthru
      _
    // Predicated region
    $region6: #{tpu_custom_call.1} parent=1 // pred_check
      _
    $region7: #{tpu_custom_call.1} parent=1 // pred_check_branch
      %22 = sbr.rel (0) target = $region9
    $region8: #{tpu_custom_call.1} parent=1 // pred_region
      %s24 = ssub.s32 1024, 1024
      %25 = vsyncadd [#allocation6], %s24
      %s26 = sshll.u32 [#allocation5], 4
      %s27 = int_to_ptr.vmem [resolvable:$true] %s26
      %32 = dma.hbm_to_vmem [thread:$0]  %s1, 1024, %s27, [#allocation6], 64, 64, 4
    $region9: #{tpu_custom_call.1} parent=1 // pred_fallthru
      _
    // Predicated region
    $region10: #{tpu_custom_call.1} parent=1 // pred_check
      _
    $region11: #{tpu_custom_call.1} parent=1 // pred_check_branch
      %34 = sbr.rel (0) target = $region13
    $region12: #{tpu_custom_call.1} parent=1 // pred_region
      _
    $region13: #{tpu_custom_call.1} parent=1 // pred_fallthru
      _
    // Predicated region
    $region14: #{tpu_custom_call.1} parent=1 // pred_check
      _
    $region15: #{tpu_custom_call.1} parent=1 // pred_check_branch
      %36 = sbr.rel (0) target = $region17
    $region16: #{tpu_custom_call.1} parent=1 // pred_region
      %37 = dma.done [#allocation3], 128
    $region17: #{tpu_custom_call.1} parent=1 // pred_fallthru
      _
    // Predicated region
    $region18: #{tpu_custom_call.1} parent=1 // pred_check
      _
    $region19: #{tpu_custom_call.1} parent=1 // pred_check_branch
      %39 = sbr.rel (0) target = $region21
    $region20: #{tpu_custom_call.1} parent=1 // pred_region
      %40 = dma.done [#allocation6], 1024
    $region21: #{tpu_custom_call.1} parent=1 // pred_fallthru
      _
    %v42 = vld [vmem:[#allocation5] sm:$0xf]
    %v43 = vld [vmem:[#allocation5 + $0x4] sm:$0xf]
    %v44 = vld [vmem:[#allocation5 + $0x8] sm:$0xf]
    %v45 = vld [vmem:[#allocation5 + $0xc] sm:$0xf]
    %v46 = vld [vmem:[#allocation5 + $0x10] sm:$0xf]
    %v47 = vld [vmem:[#allocation5 + $0x14] sm:$0xf]
    %v48 = vld [vmem:[#allocation5 + $0x18] sm:$0xf]
    %v49 = vld [vmem:[#allocation5 + $0x1c] sm:$0xf]
    %v50 = vld [vmem:[#allocation5 + $0x20] sm:$0xf]
    %v51 = vld [vmem:[#allocation5 + $0x24] sm:$0xf]
    %v52 = vld [vmem:[#allocation5 + $0x28] sm:$0xf]
    %v53 = vld [vmem:[#allocation5 + $0x2c] sm:$0xf]
    %v54 = vld [vmem:[#allocation5 + $0x30] sm:$0xf]
    %v55 = vld [vmem:[#allocation5 + $0x34] sm:$0xf]
    %v56 = vld [vmem:[#allocation5 + $0x38] sm:$0xf]
    %v57 = vld [vmem:[#allocation5 + $0x3c] sm:$0xf]
    %v58 = vld [vmem:[#allocation2] sm:$0xff]
    %v59 = vpack.c.bf16 %v58, %v58
    %v60 = vld [vmem:[%s2] sm:$0x1]
    %v62 = vlaneseq
    %v63 = vshrl.u32 %v62, 7
    %v64 = vsub.s32 0, %v63
    %v65 = vrot.slane %v60, %v64
    %v83 = vunpack.c.l.b16 %v42
    %v84 = vunpack.c.l.b16 %v43
    %v85 = vunpack.c.l.b16 %v44
    %v86 = vunpack.c.l.b16 %v45
    %v87 = vunpack.c.l.b16 %v46
    %v88 = vunpack.c.l.b16 %v47
    %v89 = vunpack.c.l.b16 %v48
    %v90 = vunpack.c.l.b16 %v49
    %v91 = vunpack.c.l.b16 %v50
    %v92 = vunpack.c.l.b16 %v51
    %v93 = vunpack.c.l.b16 %v52
    %v94 = vunpack.c.l.b16 %v53
    %v95 = vunpack.c.l.b16 %v54
    %v96 = vunpack.c.l.b16 %v55
    %v97 = vunpack.c.l.b16 %v56
    %v98 = vunpack.c.l.b16 %v57
    %v99 = vpack.c.b16 %v84, %v83
    %v100 = vpack.c.b16 %v86, %v85
    %v101 = vpack.c.b16 %v88, %v87
    %v102 = vpack.c.b16 %v90, %v89
    %v103 = vpack.c.b16 %v92, %v91
    %v104 = vpack.c.b16 %v94, %v93
    %v105 = vpack.c.b16 %v96, %v95
    %v106 = vpack.c.b16 %v98, %v97
    %115 = vmatprep.subr.bf16.mxu0 0
    %116 = vmatpush1.bf16.msra.mxu0 %v106
    %117 = vmatprep.subr.bf16.mxu0 0
    %118 = vmatpush1.bf16.msra.mxu0 %v105
    %119 = vmatprep.subr.bf16.mxu0 0
    %120 = vmatpush1.bf16.msra.mxu0 %v104
    %121 = vmatprep.subr.bf16.mxu0 0
    %122 = vmatpush1.bf16.msra.mxu0 %v103
    %123 = vmatprep.subr.bf16.mxu0 0
    %124 = vmatpush1.bf16.msra.mxu0 %v102
    %125 = vmatprep.subr.bf16.mxu0 0
    %126 = vmatpush1.bf16.msra.mxu0 %v101
    %127 = vmatprep.subr.bf16.mxu0 0
    %128 = vmatpush1.bf16.msra.mxu0 %v100
    %129 = vmatprep.subr.bf16.mxu0 0
    %130 = vmatpush1.bf16.msra.mxu0 %v99
    %131 = vmatprep.subr.bf16.mxu0 0
    %132 = vmatpush2.bf16.msra.mxu0 0
    %133 = vmatprep.subr.bf16.mxu0 0
    %134 = vmatpush2.bf16.msra.mxu0 0
    %135 = vmatprep.subr.bf16.mxu0 0
    %136 = vmatpush2.bf16.msra.mxu0 0
    %137 = vmatprep.subr.bf16.mxu0 0
    %138 = vmatpush2.bf16.msra.mxu0 0
    %139 = vmatprep.subr.bf16.mxu0 0
    %140 = vmatpush2.bf16.msra.mxu0 0
    %141 = vmatprep.subr.bf16.mxu0 0
    %142 = vmatpush2.bf16.msra.mxu0 0
    %143 = vmatprep.subr.bf16.mxu0 0
    %144 = vmatpush2.bf16.msra.mxu0 0
    %145 = vmatprep.subr.bf16.mxu0 0
    %146 = vmatpush2.bf16.msra.mxu0 0
    %147 = vmatprep.mubr.bf16.mxu0 0
    %148 = vmatmul.mubr.bf16.gmra.mxu0 %v59
    %v149 = vpop.f32.mrf.mxu0
    %v150 = vadd.f32 %v65, %v149
    %v151 = vpop.f32.mrf.mxu0
    %v152 = vpop.f32.mrf.mxu0
    %v153 = vpop.f32.mrf.mxu0
    %154 = vdwg.mxu0
    %v155 = vmax.f32 %v150, 0.0
    %156 = vst [vmem:[#allocation7] sm:$0xff] %v155
    // Predicated region
    $region22: #{tpu_custom_call.1} parent=1 // pred_check
      _
    $region23: #{tpu_custom_call.1} parent=1 // pred_check_branch
      %158 = sbr.rel (0) target = $region25
    $region24: #{tpu_custom_call.1} parent=1 // pred_region
      %s160 = ssub.s32 128, 128
      %161 = vsyncadd [#allocation4], %s160
      %s163 = sshll.u32 [#allocation7], 4
      %s164 = int_to_ptr.vmem [resolvable:$true] %s163
      %166 = dma.vmem_to_hbm [thread:$0]  %s164, 128, %s3, [#allocation4]
    $region25: #{tpu_custom_call.1} parent=1 // pred_fallthru
      _
    // Predicated region
    $region26: #{tpu_custom_call.1} parent=1 // pred_check
      _
    $region27: #{tpu_custom_call.1} parent=1 // pred_check_branch
      %168 = sbr.rel (0) target = $region29
    $region28: #{tpu_custom_call.1} parent=1 // pred_region
      %169 = dma.done [#allocation4], 128
    $region29: #{tpu_custom_call.1} parent=1 // pred_fallthru
      _
    %170 = vsyncpa [#allocation3], 1
    %171 = vsyncpa [#allocation6], 1
    %172 = vsyncpa [#allocation4], 1

</llo_original>
